<compile_context>
chip_gen: v6e
topology: v6e:2x2x1
jax: 0.10.0
libtpu: 0.0.40
codegen_flags: <defaults>
</compile_context>

<pallas_src>
import functools

import jax
import jax.numpy as jnp
from jax.experimental import pallas as pl
from jax.experimental.pallas import tpu as pltpu

LANES = 128


def _round_up(x, m):
    return (x + m - 1) // m * m


def _tpu_config():
    """Per-generation (streaming block byte budget per input per buffer, shard count)."""
    try:
        kind = jax.devices()[0].device_kind.lower()
    except Exception:
        kind = ""
    if "v7" in kind or "7x" in kind:
        # 2 TCs, ~3.2 TB/s per TC; 2 inputs x 2 buffers x 4 MiB = 16 MiB fits the
        # 32 MiB default scoped VMEM with headroom inside the 64 MiB physical budget.
        return 4 << 20, 2
    if "v6" in kind:
        # ~1.3-1.4 TB/s; 16 MiB of buffers fits the 32 MiB default scoped VMEM.
        return 4 << 20, 1
    if "v5" in kind:
        # v5e default scoped VMEM is only 16 MiB -> keep buffers at 8 MiB total.
        return 2 << 20, 1
    return 2 << 20, 1  # unknown chip: conservative


# ---------------------------------------------------------------------------
# Fused kernel: tiled MSE-sum reduction (sharded across cores on v7x) + KLD.
# ---------------------------------------------------------------------------
def _vae_loss_kernel(r_ref, x_ref, mu_ref, lv_ref,
                     mse_out, kld_out, acc_ref, *,
                     n_rows, tile_rows, steps_per_shard, batch, exact_tiling):
    s = pl.program_id(0)   # shard (parallel across cores on v7x)
    i = pl.program_id(1)   # reduction step within shard (arbitrary)

    @pl.when(i == 0)
    def _():
        acc_ref[...] = jnp.zeros_like(acc_ref)

    # Cast to f32 on the VPU; inputs stay in their native dtype in HBM.
    d = r_ref[...].astype(jnp.float32) - x_ref[...].astype(jnp.float32)
    d2 = d * d

    def _partial_sum(v):
        # (tile_rows,128) -> (tile_rows//8, 8, 128) -> (8,128): pure VPU adds.
        # The only cross-lane (XLU) reduction happens once per shard, below.
        return jnp.sum(v.reshape(tile_rows // 8, 8, LANES), axis=0)

    if exact_tiling:
        acc_ref[...] += _partial_sum(d2)
    else:
        blk = s * steps_per_shard + i            # unclamped block index
        row0 = blk * tile_rows
        in_bounds = row0 + tile_rows <= n_rows

        @pl.when(in_bounds)                      # fast path: no mask on the VPU
        def _():
            acc_ref[...] += _partial_sum(d2)

        @pl.when(jnp.logical_not(in_bounds))     # boundary / overflow blocks only
        def _():
            # Covers the partial final block and the clamped/duplicate blocks of a
            # shard that ran out of work (fully masked to zero there).
            row_ids = row0 + jax.lax.broadcasted_iota(
                jnp.int32, (tile_rows, LANES), 0)
            acc_ref[...] += _partial_sum(jnp.where(row_ids < n_rows, d2, 0.0))

    @pl.when(i == steps_per_shard - 1)
    def _():
        mse_out[0, 0] = jnp.sum(acc_ref[...])    # partial sum of squares for this shard

    # KLD is tiny (B x D); fused here so no second pallas_call is needed.
    # Every shard writes its own (identical) copy to avoid cross-core races.
    @pl.when(i == 0)
    def _():
        mu = mu_ref[...].astype(jnp.float32)
        lv = lv_ref[...].astype(jnp.float32)
        total = jnp.sum(1.0 + lv - mu * mu - jnp.exp(lv))
        kld_out[0, 0] = (-0.5 * total) / jnp.float32(batch)


# ---------------------------------------------------------------------------
# Wrapper
# ---------------------------------------------------------------------------
def vae_loss(recon, x, mu, logvar, kld_weight=1.0):
    assert recon.shape == x.shape
    n = int(recon.size)
    itemsize = jnp.dtype(recon.dtype).itemsize

    block_bytes, num_shards = _tpu_config()

    # Flatten to a lane-dense (rows, 128) view.  For the common case
    # (n % 128 == 0, true for typical image tensors) this is a free reshape:
    # no padded copies, no dtype upcast in HBM.
    def as_rows(a):
        flat = a.reshape(-1)
        rem = flat.shape[0] % LANES
        if rem != 0:
            # TODO(synk): rare non-multiple-of-128 tail still pads with a copy.
            flat = jnp.pad(flat, (0, LANES - rem))
        return flat.reshape(-1, LANES)

    r2 = as_rows(recon)
    x2 = as_rows(x)
    rows = r2.shape[0]

    # Byte-budget-derived tile: independent of dtype width, multiple of 8 sublanes.
    budget_rows = max(8, (block_bytes // (LANES * itemsize)) // 8 * 8)
    tile_rows = min(budget_rows, _round_up(rows, 8))
    num_blocks = pl.cdiv(rows, tile_rows)
    steps_per_shard = pl.cdiv(num_blocks, num_shards)
    exact_tiling = (num_shards * steps_per_shard * tile_rows == rows)

    def data_map(s, i):
        # Clamp so out-of-work shards re-read a valid block (masked in-kernel).
        blk = jnp.minimum(s * steps_per_shard + i, num_blocks - 1)
        return (blk, 0)

    B, D = mu.shape

    kernel = functools.partial(
        _vae_loss_kernel,
        n_rows=rows, tile_rows=tile_rows, steps_per_shard=steps_per_shard,
        batch=B, exact_tiling=exact_tiling)

    in_bytes = (2 * n * itemsize + 2 * B * D * jnp.dtype(mu.dtype).itemsize)
    cost = pl.CostEstimate(flops=3 * n + 5 * B * D,
                           transcendentals=B * D,
                           bytes_accessed=in_bytes + 2 * num_shards * 4)

    mse_partials, kld_partials = pl.pallas_call(
        kernel,
        out_shape=(jax.ShapeDtypeStruct((num_shards, 1), jnp.float32),
                   jax.ShapeDtypeStruct((num_shards, 1), jnp.float32)),
        grid_spec=pltpu.PrefetchScalarGridSpec(
            num_scalar_prefetch=0,
            grid=(num_shards, steps_per_shard),
            in_specs=[
                pl.BlockSpec((tile_rows, LANES), data_map),
                pl.BlockSpec((tile_rows, LANES), data_map),
                pl.BlockSpec((B, D), lambda s, i: (0, 0)),   # full array, resident
                pl.BlockSpec((B, D), lambda s, i: (0, 0)),
            ],
            out_specs=[
                pl.BlockSpec((1, 1), lambda s, i: (s, 0), memory_space=pltpu.SMEM),
                pl.BlockSpec((1, 1), lambda s, i: (s, 0), memory_space=pltpu.SMEM),
            ],
            scratch_shapes=[pltpu.VMEM((8, LANES), jnp.float32)],
        ),
        compiler_params=pltpu.CompilerParams(
            dimension_semantics=("parallel", "arbitrary")),
        cost_estimate=cost,
    )(r2, x2, mu, logvar)

    recons_loss = jnp.sum(mse_partials) / jnp.float32(n)   # MSELoss mean over ALL elems
    kld_loss = kld_partials[0, 0]
    loss = recons_loss + jnp.float32(kld_weight) * kld_loss
    return loss, recons_loss, kld_loss


def _reference(recon, x, mu, logvar, kld_weight=1.0):
    recons = jnp.mean((recon - x) ** 2)
    l_kl = -0.5 * jnp.sum(1.0 + logvar - mu ** 2 - jnp.exp(logvar), axis=1)
    kld = jnp.mean(l_kl, axis=0)
    return recons + kld_weight * kld, recons, kld


if __name__ == "__main__":
    key = jax.random.PRNGKey(0)
    k1, k2, k3, k4 = jax.random.split(key, 4)

    B, C, H, W = 2, 4, 16, 16   # image-like recon / target
    D = 32                      # latent dim

    recon = jax.random.normal(k1, (B, C, H, W), jnp.float32)
    x = jax.random.normal(k2, (B, C, H, W), jnp.float32)
    mu = jax.random.normal(k3, (B, D), jnp.float32)
    logvar = 0.1 * jax.random.normal(k4, (B, D), jnp.float32)

    loss, recons_loss, kld_loss = vae_loss(recon, x, mu, logvar, kld_weight=1.0)
    jax.block_until_ready((loss, recons_loss, kld_loss))

    ref_loss, ref_recons, ref_kld = _reference(recon, x, mu, logvar, 1.0)
    assert jnp.allclose(loss, ref_loss, rtol=1e-5, atol=1e-5)
    assert jnp.allclose(recons_loss, ref_recons, rtol=1e-5, atol=1e-5)
    assert jnp.allclose(kld_loss, ref_kld, rtol=1e-5, atol=1e-5)

    print("KERNEL_OK")
</pallas_src>

<mosaic_0001>
module attributes {stable_mosaic.version = 11 : i64} {
  func.func @_vae_loss_kernel(%arg0: i32, %arg1: i32, %arg2: memref<16x128xf32, #tpu.memory_space<vmem>>, %arg3: memref<16x128xf32, #tpu.memory_space<vmem>>, %arg4: memref<2x32xf32, #tpu.memory_space<vmem>>, %arg5: memref<2x32xf32, #tpu.memory_space<vmem>>, %arg6: memref<1x1xf32, #tpu.memory_space<smem>>, %arg7: memref<1x1xf32, #tpu.memory_space<smem>>, %arg8: memref<8x128xf32, #tpu.memory_space<vmem>>) attributes {dimension_semantics = [#tpu.dimension_semantics<parallel>, #tpu.dimension_semantics<arbitrary>], iteration_bounds = array<i64: 1, 1>, scalar_prefetch = 0 : i64, scratch_operands = 1 : i64, tpu.core_type = #tpu.core_type<tc>, window_params = [{transform_indices = @transform_0, window_bounds = array<i64: 16, 128>}, {transform_indices = @transform_1, window_bounds = array<i64: 16, 128>}, {pipeline_mode = #tpu.pipeline_mode<synchronous>, transform_indices = @transform_2, window_bounds = array<i64: 2, 32>}, {pipeline_mode = #tpu.pipeline_mode<synchronous>, transform_indices = @transform_3, window_bounds = array<i64: 2, 32>}, {transform_indices = @transform_4, window_bounds = array<i64: 1, 1>}, {transform_indices = @transform_5, window_bounds = array<i64: 1, 1>}]} {
    %c0_i32 = arith.constant 0 : i32
    %0 = arith.cmpi eq, %arg1, %c0_i32 : i32
    %1 = arith.extui %0 : i1 to i32
    %c0_i32_0 = arith.constant 0 : i32
    %2 = arith.cmpi ne, %1, %c0_i32_0 : i32
    scf.if %2 {
      %cst_12 = arith.constant 0.000000e+00 : f32
      %18 = vector.broadcast %cst_12 : f32 to vector<8x128xf32>
      %c0_13 = arith.constant 0 : index
      %c0_14 = arith.constant 0 : index
      %19 = vector.load %arg8[%c0_13, %c0_14] : memref<8x128xf32, #tpu.memory_space<vmem>>, vector<8x128xf32>
      tpu.vector_store %arg8[%c0_13, %c0_14], %18 {strides = array<i32>} : memref<8x128xf32, #tpu.memory_space<vmem>>, vector<8x128xf32>,
    } else {
    }
    %c0 = arith.constant 0 : index
    %c0_1 = arith.constant 0 : index
    %3 = vector.load %arg2[%c0, %c0_1] : memref<16x128xf32, #tpu.memory_space<vmem>>, vector<16x128xf32>
    %c0_2 = arith.constant 0 : index
    %c0_3 = arith.constant 0 : index
    %4 = vector.load %arg3[%c0_2, %c0_3] : memref<16x128xf32, #tpu.memory_space<vmem>>, vector<16x128xf32>
    %5 = arith.subf %3, %4 : vector<16x128xf32>
    %6 = arith.mulf %5, %5 : vector<16x128xf32>
    %c0_4 = arith.constant 0 : index
    %c0_5 = arith.constant 0 : index
    %7 = vector.load %arg8[%c0_4, %c0_5] : memref<8x128xf32, #tpu.memory_space<vmem>>, vector<8x128xf32>
    %8 = vector.shape_cast %6 : vector<16x128xf32> to vector<2x8x128xf32>
    %cst = arith.constant dense<0.000000e+00> : vector<8x128xf32>
    %9 = vector.multi_reduction <add>, %8, %cst [0] : vector<2x8x128xf32> to vector<8x128xf32>
    %10 = arith.addf %7, %9 : vector<8x128xf32>
    %c0_6 = arith.constant 0 : index
    %c0_7 = arith.constant 0 : index
    %11 = vector.load %arg8[%c0_6, %c0_7] : memref<8x128xf32, #tpu.memory_space<vmem>>, vector<8x128xf32>
    tpu.vector_store %arg8[%c0_6, %c0_7], %10 {strides = array<i32>} : memref<8x128xf32, #tpu.memory_space<vmem>>, vector<8x128xf32>,
    %c0_i32_8 = arith.constant 0 : i32
    %12 = arith.cmpi eq, %arg1, %c0_i32_8 : i32
    %13 = arith.extui %12 : i1 to i32
    %c0_i32_9 = arith.constant 0 : i32
    %14 = arith.cmpi ne, %13, %c0_i32_9 : i32
    scf.if %14 {
      %c0_12 = arith.constant 0 : index
      %c0_13 = arith.constant 0 : index
      %18 = vector.load %arg8[%c0_12, %c0_13] : memref<8x128xf32, #tpu.memory_space<vmem>>, vector<8x128xf32>
      %19 = vector.shape_cast %18 : vector<8x128xf32> to vector<1x8x128xf32>
      %cst_14 = arith.constant dense<0.000000e+00> : vector<1xf32>
      %20 = vector.multi_reduction <add>, %19, %cst_14 [1, 2] : vector<1x8x128xf32> to vector<1xf32>
      %21 = vector.shape_cast %20 : vector<1xf32> to vector<1x1x1xf32>
      %22 = vector.extract %21[0, 0, 0] : f32 from vector<1x1x1xf32>
      %c0_15 = arith.constant 0 : index
      %c0_16 = arith.constant 0 : index
      %23 = memref.load %arg6[%c0_15, %c0_16] : memref<1x1xf32, #tpu.memory_space<smem>>
      memref.store %22, %arg6[%c0_15, %c0_16] : memref<1x1xf32, #tpu.memory_space<smem>>
    } else {
    }
    %c0_i32_10 = arith.constant 0 : i32
    %15 = arith.cmpi eq, %arg1, %c0_i32_10 : i32
    %16 = arith.extui %15 : i1 to i32
    %c0_i32_11 = arith.constant 0 : i32
    %17 = arith.cmpi ne, %16, %c0_i32_11 : i32
    scf.if %17 {
      %c0_12 = arith.constant 0 : index
      %c0_13 = arith.constant 0 : index
      %18 = vector.load %arg4[%c0_12, %c0_13] : memref<2x32xf32, #tpu.memory_space<vmem>>, vector<2x32xf32>
      %c0_14 = arith.constant 0 : index
      %c0_15 = arith.constant 0 : index
      %19 = vector.load %arg5[%c0_14, %c0_15] : memref<2x32xf32, #tpu.memory_space<vmem>>, vector<2x32xf32>
      %cst_16 = arith.constant 1.000000e+00 : f32
      %20 = vector.broadcast %cst_16 : f32 to vector<2x32xf32>
      %21 = arith.addf %20, %19 : vector<2x32xf32>
      %22 = arith.mulf %18, %18 : vector<2x32xf32>
      %23 = arith.subf %21, %22 : vector<2x32xf32>
      %24 = math.exp %19 : vector<2x32xf32>
      %25 = arith.subf %23, %24 : vector<2x32xf32>
      %26 = vector.shape_cast %25 : vector<2x32xf32> to vector<1x2x32xf32>
      %cst_17 = arith.constant dense<0.000000e+00> : vector<1xf32>
      %27 = vector.multi_reduction <add>, %26, %cst_17 [1, 2] : vector<1x2x32xf32> to vector<1xf32>
      %28 = vector.shape_cast %27 : vector<1xf32> to vector<1x1x1xf32>
      %29 = vector.extract %28[0, 0, 0] : f32 from vector<1x1x1xf32>
      %cst_18 = arith.constant -5.000000e-01 : f32
      %30 = arith.mulf %cst_18, %29 : f32
      %cst_19 = arith.constant 2.000000e+00 : f32
      %31 = arith.divf %30, %cst_19 : f32
      %c0_20 = arith.constant 0 : index
      %c0_21 = arith.constant 0 : index
      %32 = memref.load %arg7[%c0_20, %c0_21] : memref<1x1xf32, #tpu.memory_space<smem>>
      memref.store %31, %arg7[%c0_20, %c0_21] : memref<1x1xf32, #tpu.memory_space<smem>>
    } else {
    }
    return
  }
  func.func @transform_0(%arg0: i32, %arg1: i32) -> (i32, i32) {
    %c1_i32 = arith.constant 1 : i32
    %0 = arith.muli %arg0, %c1_i32 : i32
    %1 = arith.addi %0, %arg1 : i32
    %c0_i32 = arith.constant 0 : i32
    %2 = arith.minsi %1, %c0_i32 : i32
    %c0_i32_0 = arith.constant 0 : i32
    %c0_i32_1 = arith.constant 0 : i32
    return %2, %c0_i32_0 : i32, i32
  }
  func.func @transform_1(%arg0: i32, %arg1: i32) -> (i32, i32) {
    %c1_i32 = arith.constant 1 : i32
    %0 = arith.muli %arg0, %c1_i32 : i32
    %1 = arith.addi %0, %arg1 : i32
    %c0_i32 = arith.constant 0 : i32
    %2 = arith.minsi %1, %c0_i32 : i32
    %c0_i32_0 = arith.constant 0 : i32
    %c0_i32_1 = arith.constant 0 : i32
    return %2, %c0_i32_0 : i32, i32
  }
  func.func @transform_2(%arg0: i32, %arg1: i32) -> (i32, i32) {
    %c0_i32 = arith.constant 0 : i32
    %c0_i32_0 = arith.constant 0 : i32
    %c0_i32_1 = arith.constant 0 : i32
    return %c0_i32, %c0_i32_0 : i32, i32
  }
  func.func @transform_3(%arg0: i32, %arg1: i32) -> (i32, i32) {
    %c0_i32 = arith.constant 0 : i32
    %c0_i32_0 = arith.constant 0 : i32
    %c0_i32_1 = arith.constant 0 : i32
    return %c0_i32, %c0_i32_0 : i32, i32
  }
  func.func @transform_4(%arg0: i32, %arg1: i32) -> (i32, i32) {
    %c0_i32 = arith.constant 0 : i32
    %c0_i32_0 = arith.constant 0 : i32
    return %arg0, %c0_i32 : i32, i32
  }
  func.func @transform_5(%arg0: i32, %arg1: i32) -> (i32, i32) {
    %c0_i32 = arith.constant 0 : i32
    %c0_i32_0 = arith.constant 0 : i32
    return %arg0, %c0_i32 : i32, i32
  }
}

</mosaic_0001>

<llo_original>
// kernel: tpu_custom_call.1
$region0: #{tpu_custom_call.1}
  #allocation0 [shape = 'u32[]', space=smem, size = 0x4, offset = 0x4, fixed_abs, tag = 'smem constant byte address 0x4 - core index']
  #allocation1 [shape = 'u32[144,128]{1,0:T(1,128)}', space=vmem, size = 0x12000, scoped, tag = 'internal scratch']
  #allocation2 [shape = 'f32[8,128]{1,0:T(8,128)}', space=vmem, size = 0x1000, scoped, tag = 'scratch operand']
  %s0 = inlined_call_operand.hbm [shape: f32[16,128], index: 0, kind: input, shape index: {}]
  %s1 = inlined_call_operand.hbm [shape: f32[16,128], index: 1, kind: input, shape index: {}]
  %s2 = inlined_call_operand.vmem [shape: f32[2,32], index: 2, kind: input, shape index: {}]
  %s3 = inlined_call_operand.vmem [shape: f32[2,32], index: 3, kind: input, shape index: {}]
  %s4 = inlined_call_operand.hbm [shape: f32[1,1], index: 4, kind: output, shape index: {0}]
  %s5 = inlined_call_operand.hbm [shape: f32[1,1], index: 5, kind: output, shape index: {1}]
  %6 = xla_tuple %s4, %s5
  %s7 = sld [smem:[#allocation0]]
  $region50: #{tpu_custom_call.1} parent=0
    _
  %s9 = ssub.s32 1, %s7
  %s10 = scalar_select 0, %s9, %s7
  $region1: #{tpu_custom_call.1} parent=0
    #allocation3 [shape = 'u8[8192]{0}', space=vmem, size = 0x2000, scoped, tag = 'input window, operand 0, single buffered']
    #allocation4 [shape = 's32[1]{0}', space=sflag, size = 0x4, scoped, tag = 'scoped memory for tpu_custom_call.1']
    #allocation5 [shape = 's32[1]{0}', space=sflag, size = 0x4, scoped, tag = 'scoped memory for tpu_custom_call.1']
    #allocation6 [shape = 'u8[8192]{0}', space=vmem, size = 0x2000, scoped, tag = 'input window, operand 1, single buffered']
    #allocation7 [shape = 's32[1]{0}', space=sflag, size = 0x4, scoped, tag = 'scoped memory for tpu_custom_call.1']
    #allocation8 [shape = 'u8[512]{0}', space=smem, size = 0x200, scoped, tag = 'output window, operand 0, single buffered']
    #allocation9 [shape = 'u8[512]{0}', space=smem, size = 0x200, scoped, tag = 'output window, operand 1, single buffered']
    #allocation10 [shape = 's32[1]{0}', space=sflag, size = 0x4, scoped, tag = 'scoped memory for tpu_custom_call.1']
    %11 = vsyncpa [#allocation4], 0
    %12 = vsyncpa [#allocation7], 0
    %13 = vsyncpa [#allocation5], 0
    %14 = vsyncpa [#allocation10], 0
    // Predicated region
    $region2: #{tpu_custom_call.1} parent=1 // pred_check
      _
    $region3: #{tpu_custom_call.1} parent=1 // pred_check_branch
      %16 = sbr.rel (0) target = $region5
    $region4: #{tpu_custom_call.1} parent=1 // pred_region
      %s17 = sadd.s32 0, 0
      %p18 = scmp.lt.s32.totalorder %s17, 0
      %s19 = scalar_select %p18, %s17, 0
      %s20 = smul.u32 2, %s19
      %s22 = ssub.s32 256, 256
      %23 = vsyncadd [#allocation4], %s22
      %s24 = smul.addr %s20, 128
      %s25 = scalar_lea.hbm %s0, %s24
      %s26 = sshll.u32 [#allocation3], 4
      %s27 = int_to_ptr.vmem [resolvable:$true] %s26
      %32 = dma.hbm_to_vmem [thread:$0]  %s25, 256, %s27, [#allocation4], 128, 128, 8
    $region5: #{tpu_custom_call.1} parent=1 // pred_fallthru
      _
    // Predicated region
    $region6: #{tpu_custom_call.1} parent=1 // pred_check
      _
    $region7: #{tpu_custom_call.1} parent=1 // pred_check_branch
      %34 = sbr.rel (0) target = $region9
    $region8: #{tpu_custom_call.1} parent=1 // pred_region
      %s35 = sadd.s32 0, 0
      %p36 = scmp.lt.s32.totalorder %s35, 0
      %s37 = scalar_select %p36, %s35, 0
      %s38 = smul.u32 2, %s37
      %s40 = ssub.s32 256, 256
      %41 = vsyncadd [#allocation7], %s40
      %s42 = smul.addr %s38, 128
      %s43 = scalar_lea.hbm %s1, %s42
      %s44 = sshll.u32 [#allocation6], 4
      %s45 = int_to_ptr.vmem [resolvable:$true] %s44
      %50 = dma.hbm_to_vmem [thread:$0]  %s43, 256, %s45, [#allocation7], 128, 128, 8
    $region9: #{tpu_custom_call.1} parent=1 // pred_fallthru
      _
    // Predicated region
    $region10: #{tpu_custom_call.1} parent=1 // pred_check
      _
    $region11: #{tpu_custom_call.1} parent=1 // pred_check_branch
      %52 = sbr.rel (0) target = $region13
    $region12: #{tpu_custom_call.1} parent=1 // pred_region
      _
    $region13: #{tpu_custom_call.1} parent=1 // pred_fallthru
      _
    // Predicated region
    $region14: #{tpu_custom_call.1} parent=1 // pred_check
      _
    $region15: #{tpu_custom_call.1} parent=1 // pred_check_branch
      %54 = sbr.rel (0) target = $region17
    $region16: #{tpu_custom_call.1} parent=1 // pred_region
      _
    $region17: #{tpu_custom_call.1} parent=1 // pred_fallthru
      _
    // Predicated region
    $region18: #{tpu_custom_call.1} parent=1 // pred_check
      _
    $region19: #{tpu_custom_call.1} parent=1 // pred_check_branch
      %56 = sbr.rel (0) target = $region21
    $region20: #{tpu_custom_call.1} parent=1 // pred_region
      %57 = dma.done [#allocation4], 256
    $region21: #{tpu_custom_call.1} parent=1 // pred_fallthru
      _
    // Predicated region
    $region22: #{tpu_custom_call.1} parent=1 // pred_check
      _
    $region23: #{tpu_custom_call.1} parent=1 // pred_check_branch
      %59 = sbr.rel (0) target = $region25
    $region24: #{tpu_custom_call.1} parent=1 // pred_region
      %60 = dma.done [#allocation7], 256
    $region25: #{tpu_custom_call.1} parent=1 // pred_fallthru
      _
    %s61 = sadd.s32 0, 0
    %p62 = scmp.lt.s32.totalorder %s61, 0
    %s63 = scalar_select %p62, %s61, 0
    %s64 = smul.u32 2, %s63
    %s65 = sadd.s32 0, 0
    %p66 = scmp.lt.s32.totalorder %s65, 0
    %s67 = scalar_select %p66, %s65, 0
    %s68 = smul.u32 2, %s67
    %p69 = scmp.eq.s32.totalorder 0, 0
    // Predicated region
    $region26: #{tpu_custom_call.1} parent=1 // pred_check
      %p70 = pneg %p69
    $region27: #{tpu_custom_call.1} parent=1 // pred_check_branch
      %72 = sbr.rel (%p70) target = $region29
    $region28: #{tpu_custom_call.1} parent=1 // pred_region
      %73 = vst [vmem:[#allocation2] sm:$0xff] 0.0
    $region29: #{tpu_custom_call.1} parent=1 // pred_fallthru
      _
    %v74 = vld [vmem:[#allocation3] sm:$0xff]
    %v75 = vld [vmem:[#allocation3 + $0x8] sm:$0xff]
    %v76 = vld [vmem:[#allocation6] sm:$0xff]
    %v77 = vld [vmem:[#allocation6 + $0x8] sm:$0xff]
    %v78 = vsub.f32 %v74, %v76
    %v79 = vsub.f32 %v75, %v77
    %v80 = vmul.f32 %v78, %v78
    %v81 = vmul.f32 %v79, %v79
    %v82 = vld [vmem:[#allocation2] sm:$0xff]
    %v83 = vadd.f32 %v80, %v81
    %v84 = vadd.f32 %v82, %v83
    %85 = vst [vmem:[#allocation2] sm:$0xff] %v84
    // Predicated region
    $region30: #{tpu_custom_call.1} parent=1 // pred_check
      %p86 = pneg %p69
    $region31: #{tpu_custom_call.1} parent=1 // pred_check_branch
      %88 = sbr.rel (%p86) target = $region33
    $region32: #{tpu_custom_call.1} parent=1 // pred_region
      %v89 = vld [vmem:[#allocation2] sm:$0xff]
      %90 = vadd.xlane.f32.xlu0 %v89
      %v91 = vpop.xlane.xlu0 %90
      %v92 = vrot.slane %v91, 4
      %v93 = vadd.f32 %v91, %v92
      %v94 = vrot.slane %v93, 2
      %v95 = vadd.f32 %v93, %v94
      %v96 = vrot.slane %v95, 1
      %v97 = vadd.f32 %v95, %v96
      %s98 = vtos %v97
      %s99 = scalar_lea.smem [#allocation8], 0
      %100 = sst [smem:[%s99]] %s98
      %v101 = vld [vmem:[%s2] sm:$0x3]
      %v102 = vld [vmem:[%s3] sm:$0x3]
      %v103 = vadd.f32 %v102, 1.0
      %v104 = vmul.f32 %v101, %v101
      %v105 = vsub.f32 %v103, %v104
      %v106 = vmul.f32 %v102, 1.442695
      %v107 = vpow.pop %v106
      %v108 = vsub.f32 %v105, %v107
      %vm109 = vcmask 254976
      %v110 = vsel %vm109, %v108, 0.0
      %111 = vadd.xlane.f32.xlu0 %v110
      %v112 = vpop.xlane.xlu0 %111
      %v113 = vrot.slane %v112, 4
      %v114 = vadd.f32 %v112, %v113
      %v115 = vrot.slane %v114, 2
      %v116 = vadd.f32 %v114, %v115
      %v117 = vrot.slane %v116, 1
      %v118 = vadd.f32 %v116, %v117
      %s119 = vtos %v118
      %s120 = smul.f32 %s119, -0.5
      %v121 = vrcp.pop 2.0
      %s122 = vtos %v121
      %s123 = smul.f32 %s120, %s122
      %s124 = scalar_lea.smem [#allocation9], 0
      %125 = sst [smem:[%s124]] %s123
    $region33: #{tpu_custom_call.1} parent=1 // pred_fallthru
      _
    // Predicated region
    $region34: #{tpu_custom_call.1} parent=1 // pred_check
      _
    $region35: #{tpu_custom_call.1} parent=1 // pred_check_branch
      %127 = sbr.rel (0) target = $region37
    $region36: #{tpu_custom_call.1} parent=1 // pred_region
      %s129 = ssub.s32 16, 16
      %130 = vsyncadd [#allocation5], %s129
      %133 = dma.smem_to_hbm [#allocation8], 16, %s4, [#allocation5]
    $region37: #{tpu_custom_call.1} parent=1 // pred_fallthru
      _
    // Predicated region
    $region38: #{tpu_custom_call.1} parent=1 // pred_check
      _
    $region39: #{tpu_custom_call.1} parent=1 // pred_check_branch
      %135 = sbr.rel (0) target = $region41
    $region40: #{tpu_custom_call.1} parent=1 // pred_region
      %s137 = ssub.s32 16, 16
      %138 = vsyncadd [#allocation10], %s137
      %141 = dma.smem_to_hbm [#allocation9], 16, %s5, [#allocation10]
    $region41: #{tpu_custom_call.1} parent=1 // pred_fallthru
      _
    // Predicated region
    $region42: #{tpu_custom_call.1} parent=1 // pred_check
      _
    $region43: #{tpu_custom_call.1} parent=1 // pred_check_branch
      %143 = sbr.rel (0) target = $region45
    $region44: #{tpu_custom_call.1} parent=1 // pred_region
      %144 = dma.done [#allocation5], 16
    $region45: #{tpu_custom_call.1} parent=1 // pred_fallthru
      _
    // Predicated region
    $region46: #{tpu_custom_call.1} parent=1 // pred_check
      _
    $region47: #{tpu_custom_call.1} parent=1 // pred_check_branch
      %146 = sbr.rel (0) target = $region49
    $region48: #{tpu_custom_call.1} parent=1 // pred_region
      %147 = dma.done [#allocation10], 16
    $region49: #{tpu_custom_call.1} parent=1 // pred_fallthru
      _
    %148 = sfence
    %149 = vsyncpa [#allocation4], 1
    %150 = vsyncpa [#allocation7], 1
    %151 = vsyncpa [#allocation5], 1
    %152 = vsyncpa [#allocation10], 1

</llo_original>
